<compile_context>
chip_gen: v7x
topology: tpu7x:2x2x1
jax: 0.10.0
libtpu: 0.0.40
codegen_flags: <defaults>
</compile_context>

<pallas_src>
import functools
import math

import jax
import jax.numpy as jnp
import numpy as np
from jax.experimental import pallas as pl
from jax.experimental.pallas import tpu as pltpu


def _quan_conv1d_kernel(aq_ref, w_ref, zw_ref, scale_ref, shift_ref, mask_ref,
                        x_ref, o_ref, *, K, a_qmax, first_layer, last_relu):
    """One grid step: TN whole batch elements, batch folded into the lane axis.

    x_ref     : (Cin_p,  TN*Lpad)  f32 activations (zero-padded channels / length)
    w_ref     : (K, R, Cin_p)      bf16 weight codes; row 0 of each k-slice is the
                                   ones-row (receptive-field sum), rows 1..Cout are
                                   raw per-channel codes qw in [0, 2^wbits - 1]
    zw_ref    : (R, 1)             per-channel weight zero-points (row 0 = 0)
    scale_ref : (R, 1)             folded a_scale * w_scale * gamma/sqrt(var+eps)
    shift_ref : (R, 1)             folded beta + (bias - running_mean) * bn_scale
    mask_ref  : (1, TN*Lpad)       1.0 on real columns, 0.0 on zero-padding columns
    o_ref     : (R, TN*Lpad)       conv+BN output on the padded length grid; row 0 and
                                   the last (K-1) columns of every Lpad segment are
                                   scratch (wrapper slices the valid part out).
    """
    x = x_ref[...]
    lanes = x.shape[1]

    if not first_layer:
        # nn.ReLU then AsymmetricQuantizer (layer-level stats precomputed in the
        # wrapper -> SMEM scalars, so tiling cannot change the quantizer numerics).
        x = jnp.maximum(x, 0.0)
        a_scale = aq_ref[0]
        a_zp = aq_ref[1]
        x = jnp.clip(jnp.round(x / a_scale + a_zp), 0.0, a_qmax) - a_zp

    # Padding columns must be exactly zero AFTER quantization (reference pads the
    # already-quantized input); one resident-mask multiply instead of iota/mod/where.
    a = x * mask_ref[...]

    # Quantized path feeds bf16 integer codes to the MXU (exact for 8-bit codes);
    # first_layer keeps raw f32 activations (no activation quantizer in the reference).
    op_dtype = jnp.float32 if first_layer else jnp.bfloat16

    # im2col via K accumulated matmuls on lane-rotated code tiles (XLU roll, no
    # concatenated VMEM copies).  Rotation wrap-around only feeds the per-segment
    # boundary columns that the wrapper discards.
    acc = jnp.dot(w_ref[0], a.astype(op_dtype), preferred_element_type=jnp.float32)
    for k in range(1, K):
        ak = pltpu.roll(a, shift=lanes - k, axis=1)       # ak[:, j] = a[:, j + k]
        acc = acc + jnp.dot(w_ref[k], ak.astype(op_dtype),
                            preferred_element_type=jnp.float32)

    # Row 0 is the ones-row result: S[j] = sum over the receptive field of the codes.
    # Exact zero-point correction + one per-channel scale/shift (conv bias + BN folded).
    s = acc[0:1, :]
    y = (acc - zw_ref[...] * s) * scale_ref[...] + shift_ref[...]
    if last_relu:
        y = jnp.maximum(y, 0.0)
    o_ref[...] = y.astype(o_ref.dtype)


def _per_batch_elem_bytes(cin_p, r, lpad):
    """Honest per-batch-element VMEM bytes of one grid step: double-buffered x/out
    tiles plus the in-kernel temporaries (codes, one rolled copy, bf16 cast, f32
    accumulator, result)."""
    x_tile = cin_p * lpad * 4
    out_tile = r * lpad * 4
    temps = int(2.5 * x_tile) + 2 * out_tile
    return 2 * x_tile + 2 * out_tile + temps


def _choose_batch_tile(n, lpad, per_n_bytes, budget):
    """Pick (TN, N_pad).

    Multi-step grids need the folded lane width TN*Lpad to be a multiple of 128, so TN
    moves in units of 128/gcd(Lpad, 128).  We take the largest unit-multiple that fits
    the VMEM budget, capped so the grid keeps ~2-4 steps (dual-TC sharding + DMA/compute
    overlap), and pad N up to a multiple of TN (zero batch rows, sliced off afterwards).
    If a single aligned tile would already need more batch rows than exist, fall back to
    one full-extent block (exempt from the %128 rule); for such tiny problems the
    vmem_limit headroom covers the (possibly budget-exceeding) single tile.
    """
    tn_unit = 128 // math.gcd(lpad, 128)
    if tn_unit >= n:
        return n, n
    tn_budget = max(tn_unit, (budget // max(per_n_bytes, 1)) // tn_unit * tn_unit)
    tn_pref = max(tn_unit, math.ceil(math.ceil(n / 4) / tn_unit) * tn_unit)
    tn = min(tn_budget, tn_pref)
    n_pad = math.ceil(n / tn) * tn
    return tn, n_pad


def quan_conv1d(x, weight, bias, gamma, beta, running_mean, running_var, *,
                padding=1, stride=1, abits=8, wbits=8, eps=1e-5,
                first_layer=0, last_relu=0, block_budget_bytes=None):
    # TODO(synk): stride > 1, dilation > 1 and groups > 1 are not implemented.
    assert stride == 1
    N, Cin, L = x.shape
    Cout, _, K = weight.shape
    Lout = L + 2 * padding - K + 1
    Lpad = L + 2 * padding
    f32 = jnp.float32
    x = x.astype(f32)
    w = weight.astype(f32)

    Cin_p = -(-Cin // 8) * 8          # sublane-dense x tile / weight columns
    R = Cout + 1                      # row 0 = ones-row (receptive-field sum)

    # ---- activation quantizer params (AsymmetricQuantizer, layer-level range) ----
    a_qmax = float((1 << abits) - 1)
    if first_layer:
        a_params = jnp.zeros((2,), f32)              # unused (quantizer skipped)
        a_scale_val = jnp.float32(1.0)
    else:
        xa = jnp.maximum(x, 0.0)
        a_max = jnp.max(xa)
        a_range = a_max - jnp.min(xa)
        a_scale = jnp.where(a_range > 0, a_range / a_qmax, jnp.float32(1.0))  # /0 guard
        a_zp = jnp.round(a_qmax - a_max / a_scale)
        a_params = jnp.stack([a_scale, a_zp]).astype(f32)   # (2,) -> SMEM scalars
        a_scale_val = a_scale
    # NOTE: activation codes (q - zp) are exact in bf16 because the tracked min of a
    # ReLU'd tensor is 0 (=> zp == 0); weight zero-points are handled exactly below.

    # ---- weight quantizer (per-out-channel); raw codes kept for the MXU -----------
    w_qmax = float((1 << wbits) - 1)
    w_min = jnp.min(w, axis=(1, 2), keepdims=True)
    w_max = jnp.max(w, axis=(1, 2), keepdims=True)
    w_range = w_max - w_min
    w_scale = jnp.where(w_range > 0, w_range / w_qmax, jnp.float32(1.0))      # /0 guard
    w_zp = jnp.round(w_qmax - w_max / w_scale)
    qw = jnp.clip(jnp.round(w / w_scale + w_zp), 0.0, w_qmax)   # raw codes in [0, qmax]
    wk = jnp.transpose(qw, (2, 0, 1))                           # (K, Cout, Cin)
    ones_row = jnp.ones((K, 1, Cin), f32)                       # zeros on padded chans
    wk = jnp.concatenate([ones_row, wk], axis=1)                # (K, R, Cin)
    wk = jnp.pad(wk, ((0, 0), (0, 0), (0, Cin_p - Cin))).astype(jnp.bfloat16)

    # ---- conv bias + BatchNorm1d (eval) + quant scales folded per channel ---------
    bn_scale = gamma.astype(f32) / jnp.sqrt(running_var.astype(f32) + eps)
    ch_scale = a_scale_val * w_scale.reshape(-1) * bn_scale
    ch_shift = beta.astype(f32) + (bias.astype(f32) - running_mean.astype(f32)) * bn_scale
    zero1 = jnp.zeros((1,), f32)
    scale_col = jnp.concatenate([zero1, ch_scale]).reshape(R, 1)
    shift_col = jnp.concatenate([zero1, ch_shift]).reshape(R, 1)
    zw_col = jnp.concatenate([zero1, w_zp.reshape(-1)]).reshape(R, 1)

    # ---- tiling: honest VMEM budget, >=2 grid steps when possible -----------------
    try:
        vmem_cap = int(pltpu.get_tpu_info().vmem_capacity_bytes)
    except Exception:
        vmem_cap = 64 * 1024 * 1024
    if block_budget_bytes is None:
        block_budget_bytes = min(vmem_cap // 2, 32 * 1024 * 1024)
    per_n = _per_batch_elem_bytes(Cin_p, R, Lpad)
    TN, N_pad = _choose_batch_tile(N, Lpad, per_n, block_budget_bytes)
    W_tile = TN * Lpad
    grid = (N_pad // TN,)
    vmem_limit = int(min(vmem_cap * 7 // 8,
                         max(2 * block_budget_bytes, 32 * 1024 * 1024)))

    # ---- pad (channels/batch/length) and fold batch into the lane axis ------------
    xt = jnp.transpose(x, (1, 0, 2))                             # (Cin, N, L)
    xt = jnp.pad(xt, ((0, Cin_p - Cin), (0, N_pad - N), (padding, padding)))
    xcat = xt.reshape(Cin_p, N_pad * Lpad)                       # (Cin_p, N_pad*Lpad)

    # Resident 0/1 mask for the zero-padding columns (post-quantization zeros).
    pos = np.arange(W_tile) % Lpad
    mask = jnp.asarray(((pos >= padding) & (pos < padding + L))
                       .astype(np.float32).reshape(1, W_tile))

    kernel = functools.partial(
        _quan_conv1d_kernel, K=K, a_qmax=a_qmax,
        first_layer=bool(first_layer), last_relu=bool(last_relu))

    ycat = pl.pallas_call(
        kernel,
        out_shape=jax.ShapeDtypeStruct((R, N_pad * Lpad), f32),
        grid=grid,
        in_specs=[
            pl.BlockSpec(memory_space=pltpu.MemorySpace.SMEM),      # [a_scale, a_zp]
            pl.BlockSpec((K, R, Cin_p), lambda i: (0, 0, 0)),       # bf16 weight codes
            pl.BlockSpec((R, 1), lambda i: (0, 0)),                 # weight zero-points
            pl.BlockSpec((R, 1), lambda i: (0, 0)),                 # folded scales
            pl.BlockSpec((R, 1), lambda i: (0, 0)),                 # folded shifts
            pl.BlockSpec((1, W_tile), lambda i: (0, 0)),            # padding mask
            pl.BlockSpec((Cin_p, W_tile), lambda i: (0, i)),        # activation tile
        ],
        out_specs=pl.BlockSpec((R, W_tile), lambda i: (0, i)),
        compiler_params=pltpu.CompilerParams(
            dimension_semantics=("parallel",),        # shards batch tiles on v7x cores
            vmem_limit_bytes=vmem_limit),
    )(a_params, wk, zw_col, scale_col, shift_col, mask, xcat)

    # Drop the ones-row, the padded batch rows and the boundary columns; restore
    # (N, Cout, Lout).
    out = jnp.transpose(
        ycat.reshape(R, N_pad, Lpad)[1:1 + Cout, :N, :Lout], (1, 0, 2))
    return out


def _reference(x, w, b, gamma, beta, rm, rv, *, padding, eps, abits, wbits,
               first_layer, last_relu):
    if not first_layer:
        x = jnp.maximum(x, 0.0)
        a_qmax = float((1 << abits) - 1)
        a_min, a_max = jnp.min(x), jnp.max(x)
        a_scale = (a_max - a_min) / a_qmax
        a_zp = jnp.round(a_qmax - a_max / a_scale)
        x = (jnp.clip(jnp.round(x / a_scale + a_zp), 0.0, a_qmax) - a_zp) * a_scale
    w_qmax = float((1 << wbits) - 1)
    w_min = jnp.min(w, axis=(1, 2), keepdims=True)
    w_max = jnp.max(w, axis=(1, 2), keepdims=True)
    w_scale = (w_max - w_min) / w_qmax
    w_zp = jnp.round(w_qmax - w_max / w_scale)
    wq = (jnp.clip(jnp.round(w / w_scale + w_zp), 0.0, w_qmax) - w_zp) * w_scale
    out = jax.lax.conv_general_dilated(x, wq, (1,), [(padding, padding)],
                                       dimension_numbers=('NCH', 'OIH', 'NCH'))
    out = out + b[None, :, None]
    out = (out - rm[None, :, None]) / jnp.sqrt(rv[None, :, None] + eps) \
        * gamma[None, :, None] + beta[None, :, None]
    if last_relu:
        out = jnp.maximum(out, 0.0)
    return out


def _run_case(key, N, Cin, Cout, L, K, pad, last_relu=0, **kwargs):
    kx, kw, kb, kg, kbt, krm, krv = jax.random.split(key, 7)
    x = jax.random.normal(kx, (N, Cin, L), jnp.float32)
    bound = 1.0 / np.sqrt(Cin * K)
    weight = jax.random.uniform(kw, (Cout, Cin, K), jnp.float32, -bound, bound)
    bias = jax.random.uniform(kb, (Cout,), jnp.float32, -bound, bound)
    gamma = jax.random.uniform(kg, (Cout,), jnp.float32, 0.5, 1.5)
    beta = jax.random.uniform(kbt, (Cout,), jnp.float32, -0.1, 0.1)
    rm = jax.random.uniform(krm, (Cout,), jnp.float32, -0.2, 0.2)
    rv = jax.random.uniform(krv, (Cout,), jnp.float32, 0.5, 1.5)

    out = quan_conv1d(x, weight, bias, gamma, beta, rm, rv,
                      padding=pad, stride=1, abits=8, wbits=8,
                      first_layer=0, last_relu=last_relu, **kwargs)
    out = jax.block_until_ready(out)
    ref = _reference(x, weight, bias, gamma, beta, rm, rv,
                     padding=pad, eps=1e-5, abits=8, wbits=8,
                     first_layer=0, last_relu=last_relu)
    np.testing.assert_allclose(np.asarray(out), np.asarray(ref), rtol=1e-4, atol=1e-4)


if __name__ == "__main__":
    key = jax.random.PRNGKey(0)
    k1, k2, k3 = jax.random.split(key, 3)

    # QuanConv1d(input_channels=4, output_channels=8, kernel_size=3, stride=1, padding=1)
    # Single-step grid (full-extent block), Cin padded 4 -> 8.
    _run_case(k1, N=2, Cin=4, Cout=8, L=16, K=3, pad=1)

    # Larger case: Lpad=32 -> TN unit 4, small budget -> 4-step pipelined grid; also
    # covers the trailing ReLU branch.
    _run_case(k2, N=16, Cin=8, Cout=16, L=30, K=3, pad=1, last_relu=1,
              block_budget_bytes=64_000)

    # Awkward batch/channel counts: N=6 padded up to 8 (2 grid steps), Cin=5 padded
    # to 8, Cout=10.
    _run_case(k3, N=6, Cin=5, Cout=10, L=30, K=3, pad=1)

    print("KERNEL_OK")
</pallas_src>

<mosaic_0001>
module attributes {stable_mosaic.version = 11 : i64} {
  func.func @_quan_conv1d_kernel(%arg0: i32, %arg1: memref<2xf32, #tpu.memory_space<smem>>, %arg2: memref<3x9x8xbf16, #tpu.memory_space<vmem>>, %arg3: memref<9x1xf32, #tpu.memory_space<vmem>>, %arg4: memref<9x1xf32, #tpu.memory_space<vmem>>, %arg5: memref<9x1xf32, #tpu.memory_space<vmem>>, %arg6: memref<1x36xf32, #tpu.memory_space<vmem>>, %arg7: memref<8x36xf32, #tpu.memory_space<vmem>>, %arg8: memref<9x36xf32, #tpu.memory_space<vmem>>) attributes {dimension_semantics = [#tpu.dimension_semantics<parallel>], iteration_bounds = array<i64: 1>, scalar_prefetch = 0 : i64, scratch_operands = 0 : i64, tpu.core_type = #tpu.core_type<tc>, window_params = [{transform_indices = @transform_0, window_bounds = array<i64: 2>}, {pipeline_mode = #tpu.pipeline_mode<synchronous>, transform_indices = @transform_1, window_bounds = array<i64: 3, 9, 8>}, {pipeline_mode = #tpu.pipeline_mode<synchronous>, transform_indices = @transform_2, window_bounds = array<i64: 9, 1>}, {pipeline_mode = #tpu.pipeline_mode<synchronous>, transform_indices = @transform_3, window_bounds = array<i64: 9, 1>}, {pipeline_mode = #tpu.pipeline_mode<synchronous>, transform_indices = @transform_4, window_bounds = array<i64: 9, 1>}, {pipeline_mode = #tpu.pipeline_mode<synchronous>, transform_indices = @transform_5, window_bounds = array<i64: 1, 36>}, {transform_indices = @transform_6, window_bounds = array<i64: 8, 36>}, {transform_indices = @transform_7, window_bounds = array<i64: 9, 36>}]} {
    %c0 = arith.constant 0 : index
    %c0_0 = arith.constant 0 : index
    %0 = vector.load %arg7[%c0, %c0_0] : memref<8x36xf32, #tpu.memory_space<vmem>>, vector<8x36xf32>
    %cst = arith.constant 0.000000e+00 : f32
    %1 = vector.broadcast %cst : f32 to vector<8x36xf32>
    %2 = arith.maximumf %0, %1 : vector<8x36xf32>
    %c0_1 = arith.constant 0 : index
    %3 = memref.load %arg1[%c0_1] : memref<2xf32, #tpu.memory_space<smem>>
    %c1 = arith.constant 1 : index
    %4 = memref.load %arg1[%c1] : memref<2xf32, #tpu.memory_space<smem>>
    %5 = vector.broadcast %3 : f32 to vector<8x36xf32>
    %6 = arith.divf %2, %5 : vector<8x36xf32>
    %7 = vector.broadcast %4 : f32 to vector<8x36xf32>
    %8 = arith.addf %6, %7 : vector<8x36xf32>
    %9 = math.roundeven %8 : vector<8x36xf32>
    %cst_2 = arith.constant 0.000000e+00 : f32
    %cst_3 = arith.constant 2.550000e+02 : f32
    %10 = vector.broadcast %cst_2 : f32 to vector<8x36xf32>
    %11 = arith.maximumf %10, %9 : vector<8x36xf32>
    %12 = vector.broadcast %cst_3 : f32 to vector<8x36xf32>
    %13 = arith.minimumf %12, %11 : vector<8x36xf32>
    %14 = vector.broadcast %4 : f32 to vector<8x36xf32>
    %15 = arith.subf %13, %14 : vector<8x36xf32>
    %c0_4 = arith.constant 0 : index
    %c0_5 = arith.constant 0 : index
    %16 = vector.load %arg6[%c0_4, %c0_5] : memref<1x36xf32, #tpu.memory_space<vmem>>, vector<1x36xf32>
    %17 = vector.broadcast %16 : vector<1x36xf32> to vector<8x36xf32>
    %18 = arith.mulf %15, %17 : vector<8x36xf32>
    %c0_6 = arith.constant 0 : index
    %c0_7 = arith.constant 0 : index
    %c0_8 = arith.constant 0 : index
    %19 = vector.load %arg2[%c0_6, %c0_7, %c0_8] : memref<3x9x8xbf16, #tpu.memory_space<vmem>>, vector<1x9x8xbf16>
    %20 = vector.shape_cast %19 : vector<1x9x8xbf16> to vector<9x8xbf16>
    %21 = arith.truncf %18 : vector<8x36xf32> to vector<8x36xbf16>
    %cst_9 = arith.constant dense<0.000000e+00> : vector<9x36xf32>
    %22 = tpu.matmul %20, %21, %cst_9 {dimension_numbers = #tpu.dot_dimension_numbers<[1], [0], [0], [1], [0, 0, 1, 1], [], []>} : vector<9x8xbf16>, vector<8x36xbf16>, vector<9x36xf32> -> vector<9x36xf32>
    %c35_i32 = arith.constant 35 : i32
    %23 = tpu.dynamic_rotate %18 by %c35_i32 dim 1 : vector<8x36xf32>, i32 -> vector<8x36xf32>
    %c1_10 = arith.constant 1 : index
    %c0_11 = arith.constant 0 : index
    %c0_12 = arith.constant 0 : index
    %24 = vector.load %arg2[%c1_10, %c0_11, %c0_12] : memref<3x9x8xbf16, #tpu.memory_space<vmem>>, vector<1x9x8xbf16>
    %25 = vector.shape_cast %24 : vector<1x9x8xbf16> to vector<9x8xbf16>
    %26 = arith.truncf %23 : vector<8x36xf32> to vector<8x36xbf16>
    %cst_13 = arith.constant dense<0.000000e+00> : vector<9x36xf32>
    %27 = tpu.matmul %25, %26, %cst_13 {dimension_numbers = #tpu.dot_dimension_numbers<[1], [0], [0], [1], [0, 0, 1, 1], [], []>} : vector<9x8xbf16>, vector<8x36xbf16>, vector<9x36xf32> -> vector<9x36xf32>
    %28 = arith.addf %22, %27 : vector<9x36xf32>
    %c34_i32 = arith.constant 34 : i32
    %29 = tpu.dynamic_rotate %18 by %c34_i32 dim 1 : vector<8x36xf32>, i32 -> vector<8x36xf32>
    %c2 = arith.constant 2 : index
    %c0_14 = arith.constant 0 : index
    %c0_15 = arith.constant 0 : index
    %30 = vector.load %arg2[%c2, %c0_14, %c0_15] : memref<3x9x8xbf16, #tpu.memory_space<vmem>>, vector<1x9x8xbf16>
    %31 = vector.shape_cast %30 : vector<1x9x8xbf16> to vector<9x8xbf16>
    %32 = arith.truncf %29 : vector<8x36xf32> to vector<8x36xbf16>
    %cst_16 = arith.constant dense<0.000000e+00> : vector<9x36xf32>
    %33 = tpu.matmul %31, %32, %cst_16 {dimension_numbers = #tpu.dot_dimension_numbers<[1], [0], [0], [1], [0, 0, 1, 1], [], []>} : vector<9x8xbf16>, vector<8x36xbf16>, vector<9x36xf32> -> vector<9x36xf32>
    %34 = arith.addf %28, %33 : vector<9x36xf32>
    %35 = vector.extract_strided_slice %34 {offsets = [0, 0], sizes = [1, 36], strides = [1, 1]} : vector<9x36xf32> to vector<1x36xf32>
    %c0_17 = arith.constant 0 : index
    %c0_18 = arith.constant 0 : index
    %36 = vector.load %arg3[%c0_17, %c0_18] : memref<9x1xf32, #tpu.memory_space<vmem>>, vector<9x1xf32>
    %37 = vector.broadcast %36 : vector<9x1xf32> to vector<9x36xf32>
    %38 = vector.broadcast %35 : vector<1x36xf32> to vector<9x36xf32>
    %39 = arith.mulf %37, %38 : vector<9x36xf32>
    %40 = arith.subf %34, %39 : vector<9x36xf32>
    %c0_19 = arith.constant 0 : index
    %c0_20 = arith.constant 0 : index
    %41 = vector.load %arg4[%c0_19, %c0_20] : memref<9x1xf32, #tpu.memory_space<vmem>>, vector<9x1xf32>
    %42 = vector.broadcast %41 : vector<9x1xf32> to vector<9x36xf32>
    %43 = arith.mulf %40, %42 : vector<9x36xf32>
    %c0_21 = arith.constant 0 : index
    %c0_22 = arith.constant 0 : index
    %44 = vector.load %arg5[%c0_21, %c0_22] : memref<9x1xf32, #tpu.memory_space<vmem>>, vector<9x1xf32>
    %45 = vector.broadcast %44 : vector<9x1xf32> to vector<9x36xf32>
    %46 = arith.addf %43, %45 : vector<9x36xf32>
    %c0_23 = arith.constant 0 : index
    %c0_24 = arith.constant 0 : index
    %47 = vector.load %arg8[%c0_23, %c0_24] : memref<9x36xf32, #tpu.memory_space<vmem>>, vector<9x36xf32>
    tpu.vector_store %arg8[%c0_23, %c0_24], %46 {strides = array<i32>} : memref<9x36xf32, #tpu.memory_space<vmem>>, vector<9x36xf32>,
    return
  }
  func.func @transform_0(%arg0: i32) -> i32 {
    %c0_i32 = arith.constant 0 : i32
    %c0_i32_0 = arith.constant 0 : i32
    return %c0_i32 : i32
  }
  func.func @transform_1(%arg0: i32) -> (i32, i32, i32) {
    %c0_i32 = arith.constant 0 : i32
    %c0_i32_0 = arith.constant 0 : i32
    %c0_i32_1 = arith.constant 0 : i32
    %c0_i32_2 = arith.constant 0 : i32
    return %c0_i32, %c0_i32_0, %c0_i32_1 : i32, i32, i32
  }
  func.func @transform_2(%arg0: i32) -> (i32, i32) {
    %c0_i32 = arith.constant 0 : i32
    %c0_i32_0 = arith.constant 0 : i32
    %c0_i32_1 = arith.constant 0 : i32
    return %c0_i32, %c0_i32_0 : i32, i32
  }
  func.func @transform_3(%arg0: i32) -> (i32, i32) {
    %c0_i32 = arith.constant 0 : i32
    %c0_i32_0 = arith.constant 0 : i32
    %c0_i32_1 = arith.constant 0 : i32
    return %c0_i32, %c0_i32_0 : i32, i32
  }
  func.func @transform_4(%arg0: i32) -> (i32, i32) {
    %c0_i32 = arith.constant 0 : i32
    %c0_i32_0 = arith.constant 0 : i32
    %c0_i32_1 = arith.constant 0 : i32
    return %c0_i32, %c0_i32_0 : i32, i32
  }
  func.func @transform_5(%arg0: i32) -> (i32, i32) {
    %c0_i32 = arith.constant 0 : i32
    %c0_i32_0 = arith.constant 0 : i32
    %c0_i32_1 = arith.constant 0 : i32
    return %c0_i32, %c0_i32_0 : i32, i32
  }
  func.func @transform_6(%arg0: i32) -> (i32, i32) {
    %c0_i32 = arith.constant 0 : i32
    %c0_i32_0 = arith.constant 0 : i32
    return %c0_i32, %arg0 : i32, i32
  }
  func.func @transform_7(%arg0: i32) -> (i32, i32) {
    %c0_i32 = arith.constant 0 : i32
    %c0_i32_0 = arith.constant 0 : i32
    return %c0_i32, %arg0 : i32, i32
  }
}

</mosaic_0001>

<llo_original>
// kernel: tpu_custom_call.1
$region0: #{tpu_custom_call.1}
  #allocation0 [shape = 'u32[]', space=smem, size = 0x4, offset = 0x4, fixed_abs, tag = 'smem constant byte address 0x4 - core index']
  #allocation1 [shape = 'u32[144,128]{1,0:T(1,128)}', space=vmem, size = 0x12000, scoped, tag = 'internal scratch']
  %s0 = inlined_call_operand.vmem [shape: f32[2], index: 0, kind: input, shape index: {}]
  %s1 = inlined_call_operand.vmem [shape: bf16[3,9,8], index: 1, kind: input, shape index: {}]
  %s2 = inlined_call_operand.vmem [shape: f32[9,1], index: 2, kind: input, shape index: {}]
  %s3 = inlined_call_operand.vmem [shape: f32[9,1], index: 3, kind: input, shape index: {}]
  %s4 = inlined_call_operand.vmem [shape: f32[9,1], index: 4, kind: input, shape index: {}]
  %s5 = inlined_call_operand.vmem [shape: f32[1,36], index: 5, kind: input, shape index: {}]
  %s6 = inlined_call_operand.vmem [shape: f32[8,36], index: 6, kind: input, shape index: {}]
  %s7 = inlined_call_operand.hbm [shape: f32[9,36], index: 7, kind: output, shape index: {}]
  %s8 = sld [smem:[#allocation0]]
  $region42: #{tpu_custom_call.1} parent=0
    _
  %s10 = ssub.s32 1, %s8
  %s11 = scalar_select 0, %s10, %s8
  $region1: #{tpu_custom_call.1} parent=0
    #allocation2 [shape = 'u8[512]{0}', space=smem, size = 0x200, scoped, tag = 'input window, operand 0, single buffered']
    #allocation3 [shape = 's32[1]{0}', space=sflag, size = 0x4, scoped, tag = 'scoped memory for tpu_custom_call.1']
    #allocation4 [shape = 's32[1]{0}', space=sflag, size = 0x4, scoped, tag = 'scoped memory for tpu_custom_call.1']
    #allocation5 [shape = 'u8[8192]{0}', space=vmem, size = 0x2000, scoped, tag = 'output window, operand 0, single buffered']
    %12 = vsyncpa [#allocation4], 0
    %13 = vsyncpa [#allocation3], 0
    // Predicated region
    $region2: #{tpu_custom_call.1} parent=1 // pred_check
      _
    $region3: #{tpu_custom_call.1} parent=1 // pred_check_branch
      %15 = sbr.rel (0) target = $region5
    $region4: #{tpu_custom_call.1} parent=1 // pred_region
      %s17 = ssub.s32 16, 16
      %18 = vsyncadd [#allocation4], %s17
      %s20 = sshll.u32 %s0, 4
      %s21 = int_to_ptr.vmem [resolvable:$true] %s20
      %23 = dma.vmem_to_smem %s21, 16, [#allocation2], [#allocation4]
    $region5: #{tpu_custom_call.1} parent=1 // pred_fallthru
      _
    // Predicated region
    $region6: #{tpu_custom_call.1} parent=1 // pred_check
      _
    $region7: #{tpu_custom_call.1} parent=1 // pred_check_branch
      %25 = sbr.rel (0) target = $region9
    $region8: #{tpu_custom_call.1} parent=1 // pred_region
      _
    $region9: #{tpu_custom_call.1} parent=1 // pred_fallthru
      _
    // Predicated region
    $region10: #{tpu_custom_call.1} parent=1 // pred_check
      _
    $region11: #{tpu_custom_call.1} parent=1 // pred_check_branch
      %27 = sbr.rel (0) target = $region13
    $region12: #{tpu_custom_call.1} parent=1 // pred_region
      _
    $region13: #{tpu_custom_call.1} parent=1 // pred_fallthru
      _
    // Predicated region
    $region14: #{tpu_custom_call.1} parent=1 // pred_check
      _
    $region15: #{tpu_custom_call.1} parent=1 // pred_check_branch
      %29 = sbr.rel (0) target = $region17
    $region16: #{tpu_custom_call.1} parent=1 // pred_region
      _
    $region17: #{tpu_custom_call.1} parent=1 // pred_fallthru
      _
    // Predicated region
    $region18: #{tpu_custom_call.1} parent=1 // pred_check
      _
    $region19: #{tpu_custom_call.1} parent=1 // pred_check_branch
      %31 = sbr.rel (0) target = $region21
    $region20: #{tpu_custom_call.1} parent=1 // pred_region
      _
    $region21: #{tpu_custom_call.1} parent=1 // pred_fallthru
      _
    // Predicated region
    $region22: #{tpu_custom_call.1} parent=1 // pred_check
      _
    $region23: #{tpu_custom_call.1} parent=1 // pred_check_branch
      %33 = sbr.rel (0) target = $region25
    $region24: #{tpu_custom_call.1} parent=1 // pred_region
      _
    $region25: #{tpu_custom_call.1} parent=1 // pred_fallthru
      _
    // Predicated region
    $region26: #{tpu_custom_call.1} parent=1 // pred_check
      _
    $region27: #{tpu_custom_call.1} parent=1 // pred_check_branch
      %35 = sbr.rel (0) target = $region29
    $region28: #{tpu_custom_call.1} parent=1 // pred_region
      _
    $region29: #{tpu_custom_call.1} parent=1 // pred_fallthru
      _
    // Predicated region
    $region30: #{tpu_custom_call.1} parent=1 // pred_check
      _
    $region31: #{tpu_custom_call.1} parent=1 // pred_check_branch
      %37 = sbr.rel (0) target = $region33
    $region32: #{tpu_custom_call.1} parent=1 // pred_region
      %38 = dma.done [#allocation4], 16
    $region33: #{tpu_custom_call.1} parent=1 // pred_fallthru
      _
    %39 = sfence
    %v41 = vld [vmem:[%s6] sm:$0xff]
    %v42 = vmax.f32 %v41, 0.0
    %s43 = sld [smem:[#allocation2]]
    %s44 = sld [smem:[#allocation2 + $0x1]]
    %v45 = vstv %s43
    %v46 = vrcp.pop %v45
    %v47 = vmul.f32 %v42, %v46
    %v48 = vstv %s44
    %v49 = vadd.f32 %v47, %v48
    %v50 = vround.ne.pseudo %v49
    %v51 = vmax.f32 %v50, 0.0
    %v52 = vmin.f32 %v51, 255.0
    %v53 = vsub.f32 %v52, %v48
    %v54 = vld [vmem:[%s5] sm:$0x1]
    %v56 = vlaneseq
    %v57 = vshrl.u32 %v56, 7
    %v58 = vsub.s32 0, %v57
    %v59 = vrot.slane %v54, %v58
    %v61 = vmul.f32 %v53, %v59
    %v62 = vld [vmem:[%s1] sm:$0xf]
    %v63 = vld [vmem:[%s1 + $0x4] sm:$0x1]
    %v64 = vpack.c.bf16 %v61, %v61
    %vm65 = vcmask 1047840
    %66 = vrot.lane.b32.xlu0 %v61, 36
    %v67 = vpop.permute.xlu0 %66
    %v68 = vsel %vm65, %v67, %v61
    %69 = vrot.lane.b32.xlu0 %v68, 36
    %v70 = vpop.permute.xlu0 %69
    %v71 = vsel %vm65, %v70, %v61
    %s72 = scalar_lea.vmem %s1, 8
    %v73 = vld [vmem:[%s72] sm:$0xf]
    %v74 = vld [vmem:[%s72 + $0x4] sm:$0x1]
    %v75 = vpack.c.bf16 %v71, %v71
    %v78 = vunpack.c.l.b16 %v73
    %v79 = vunpack.c.l.b16 %v74
    %v80 = vpack.c.b16 %v79, %v78
    %82 = vrot.lane.b32.xlu0 %v75, 127
    %v83 = vpop.permute.xlu0 %82
    %vm84 = vcmask 64512
    %v86 = vsel %vm84, %v80, 0
    %vm88 = vcmask 1043456
    %v90 = vsel %vm88, %v83, 0
    %92 = vmatprep.subr.bf16.mxu0 0
    %93 = vmatpush1.bf16.msra.mxu0 %v90
    %94 = vmatprep.subr.bf16.mxu0 0
    %95 = vmatpush1.bf16.msra.mxu0 0
    %96 = vmatprep.subr.bf16.mxu0 0
    %97 = vmatpush1.bf16.msra.mxu0 0
    %98 = vmatprep.subr.bf16.mxu0 0
    %99 = vmatpush1.bf16.msra.mxu0 0
    %100 = vmatprep.subr.bf16.mxu0 0
    %101 = vmatpush1.bf16.msra.mxu0 0
    %102 = vmatprep.subr.bf16.mxu0 0
    %103 = vmatpush1.bf16.msra.mxu0 0
    %104 = vmatprep.subr.bf16.mxu0 0
    %105 = vmatpush1.bf16.msra.mxu0 0
    %106 = vmatprep.subr.bf16.mxu0 0
    %107 = vmatpush1.bf16.msra.mxu0 0
    %108 = vmatprep.subr.bf16.mxu0 0
    %109 = vmatpush1.bf16.msra.mxu0 0
    %110 = vmatprep.subr.bf16.mxu0 0
    %111 = vmatpush1.bf16.msra.mxu0 0
    %112 = vmatprep.subr.bf16.mxu0 0
    %113 = vmatpush1.bf16.msra.mxu0 0
    %114 = vmatprep.subr.bf16.mxu0 0
    %115 = vmatpush1.bf16.msra.mxu0 0
    %116 = vmatprep.subr.bf16.mxu0 0
    %117 = vmatpush1.bf16.msra.mxu0 0
    %118 = vmatprep.subr.bf16.mxu0 0
    %119 = vmatpush1.bf16.msra.mxu0 0
    %120 = vmatprep.subr.bf16.mxu0 0
    %121 = vmatpush1.bf16.msra.mxu0 0
    %122 = vmatprep.subr.bf16.mxu0 0
    %123 = vmatpush1.bf16.msra.mxu0 0
    %124 = vmatprep.mubr.bf16.mxu0 0
    %125 = vmatmul.mubr.bf16.gmra.mrb[0].mxu0 %v86
    %v126 = vpop.f32.mrb[0].mxu0
    %v127 = vadd.f32 0.0, %v126
    %v128 = vpop.f32.mrb[0].mxu0
    %v129 = vpop.f32.mrb[0].mxu0
    %v130 = vadd.f32 0.0, %v129
    %v131 = vpop.f32.mrb[0].mxu0
    %132 = vdwg.mxu0
    %v135 = vunpack.c.l.b16 %v62
    %v136 = vunpack.c.l.b16 %v63
    %v137 = vpack.c.b16 %v136, %v135
    %v139 = vsel %vm84, %v137, 0
    %v142 = vsel %vm88, %v64, 0
    %144 = vmatprep.subr.bf16.mxu0 0
    %145 = vmatpush1.bf16.msra.mxu0 %v142
    %146 = vmatprep.subr.bf16.mxu0 0
    %147 = vmatpush1.bf16.msra.mxu0 0
    %148 = vmatprep.subr.bf16.mxu0 0
    %149 = vmatpush1.bf16.msra.mxu0 0
    %150 = vmatprep.subr.bf16.mxu0 0
    %151 = vmatpush1.bf16.msra.mxu0 0
    %152 = vmatprep.subr.bf16.mxu0 0
    %153 = vmatpush1.bf16.msra.mxu0 0
    %154 = vmatprep.subr.bf16.mxu0 0
    %155 = vmatpush1.bf16.msra.mxu0 0
    %156 = vmatprep.subr.bf16.mxu0 0
    %157 = vmatpush1.bf16.msra.mxu0 0
    %158 = vmatprep.subr.bf16.mxu0 0
    %159 = vmatpush1.bf16.msra.mxu0 0
    %160 = vmatprep.subr.bf16.mxu0 0
    %161 = vmatpush1.bf16.msra.mxu0 0
    %162 = vmatprep.subr.bf16.mxu0 0
    %163 = vmatpush1.bf16.msra.mxu0 0
    %164 = vmatprep.subr.bf16.mxu0 0
    %165 = vmatpush1.bf16.msra.mxu0 0
    %166 = vmatprep.subr.bf16.mxu0 0
    %167 = vmatpush1.bf16.msra.mxu0 0
    %168 = vmatprep.subr.bf16.mxu0 0
    %169 = vmatpush1.bf16.msra.mxu0 0
    %170 = vmatprep.subr.bf16.mxu0 0
    %171 = vmatpush1.bf16.msra.mxu0 0
    %172 = vmatprep.subr.bf16.mxu0 0
    %173 = vmatpush1.bf16.msra.mxu0 0
    %174 = vmatprep.subr.bf16.mxu0 0
    %175 = vmatpush1.bf16.msra.mxu0 0
    %176 = vmatprep.mubr.bf16.mxu0 0
    %177 = vmatmul.mubr.bf16.gmra.mrb[0].mxu0 %v139
    %v178 = vpop.f32.mrb[0].mxu0
    %v179 = vadd.f32 %v127, %v178
    %v180 = vpop.f32.mrb[0].mxu0
    %v181 = vpop.f32.mrb[0].mxu0
    %v182 = vadd.f32 %v130, %v181
    %v183 = vpop.f32.mrb[0].mxu0
    %184 = vdwg.mxu0
    %s185 = scalar_lea.vmem %s1, 16
    %v186 = vld [vmem:[%s185] sm:$0xf]
    %v187 = vld [vmem:[%s185 + $0x4] sm:$0x1]
    %v190 = vunpack.c.l.b16 %v186
    %v191 = vunpack.c.l.b16 %v187
    %v192 = vpack.c.b16 %v191, %v190
    %193 = vrot.lane.b32.xlu0 %v75, 126
    %v194 = vpop.permute.xlu0 %193
    %v196 = vsel %vm84, %v192, 0
    %v199 = vsel %vm88, %v194, 0
    %201 = vmatprep.subr.bf16.mxu0 0
    %202 = vmatpush1.bf16.msra.mxu0 %v199
    %203 = vmatprep.subr.bf16.mxu0 0
    %204 = vmatpush1.bf16.msra.mxu0 0
    %205 = vmatprep.subr.bf16.mxu0 0
    %206 = vmatpush1.bf16.msra.mxu0 0
    %207 = vmatprep.subr.bf16.mxu0 0
    %208 = vmatpush1.bf16.msra.mxu0 0
    %209 = vmatprep.subr.bf16.mxu0 0
    %210 = vmatpush1.bf16.msra.mxu0 0
    %211 = vmatprep.subr.bf16.mxu0 0
    %212 = vmatpush1.bf16.msra.mxu0 0
    %213 = vmatprep.subr.bf16.mxu0 0
    %214 = vmatpush1.bf16.msra.mxu0 0
    %215 = vmatprep.subr.bf16.mxu0 0
    %216 = vmatpush1.bf16.msra.mxu0 0
    %217 = vmatprep.subr.bf16.mxu0 0
    %218 = vmatpush1.bf16.msra.mxu0 0
    %219 = vmatprep.subr.bf16.mxu0 0
    %220 = vmatpush1.bf16.msra.mxu0 0
    %221 = vmatprep.subr.bf16.mxu0 0
    %222 = vmatpush1.bf16.msra.mxu0 0
    %223 = vmatprep.subr.bf16.mxu0 0
    %224 = vmatpush1.bf16.msra.mxu0 0
    %225 = vmatprep.subr.bf16.mxu0 0
    %226 = vmatpush1.bf16.msra.mxu0 0
    %227 = vmatprep.subr.bf16.mxu0 0
    %228 = vmatpush1.bf16.msra.mxu0 0
    %229 = vmatprep.subr.bf16.mxu0 0
    %230 = vmatpush1.bf16.msra.mxu0 0
    %231 = vmatprep.subr.bf16.mxu0 0
    %232 = vmatpush1.bf16.msra.mxu0 0
    %233 = vmatprep.mubr.bf16.mxu0 0
    %234 = vmatmul.mubr.bf16.gmra.mrb[0].mxu0 %v196
    %v235 = vpop.f32.mrb[0].mxu0
    %v236 = vadd.f32 0.0, %v235
    %v237 = vpop.f32.mrb[0].mxu0
    %v238 = vpop.f32.mrb[0].mxu0
    %v239 = vadd.f32 0.0, %v238
    %v240 = vpop.f32.mrb[0].mxu0
    %241 = vdwg.mxu0
    %v242 = vadd.f32 %v179, %v236
    %v243 = vadd.f32 %v182, %v239
    %v244 = vld [vmem:[%s2] sm:$0xff]
    %v245 = vld [vmem:[%s2 + $0x8] sm:$0x1]
    %247 = vset.pattern.permute.xlu0 0
    %248 = vperm.xlu0 %247, %v244
    %v249 = vpop.permute.xlu0 %248
    %252 = vset.pattern.permute.xlu0 0
    %253 = vperm.xlu0 %252, %v245
    %v254 = vpop.permute.xlu0 %253
    %v256 = vlaneseq
    %v257 = vshrl.u32 %v256, 7
    %v258 = vsub.s32 0, %v257
    %v259 = vrot.slane %v242, %v258
    %v260 = vmul.f32 %v249, %v259
    %v261 = vmul.f32 %v254, %v259
    %v262 = vsub.f32 %v242, %v260
    %v263 = vsub.f32 %v243, %v261
    %v264 = vld [vmem:[%s3] sm:$0xff]
    %v265 = vld [vmem:[%s3 + $0x8] sm:$0x1]
    %267 = vset.pattern.permute.xlu0 0
    %268 = vperm.xlu0 %267, %v264
    %v269 = vpop.permute.xlu0 %268
    %272 = vset.pattern.permute.xlu0 0
    %273 = vperm.xlu0 %272, %v265
    %v274 = vpop.permute.xlu0 %273
    %v276 = vmul.f32 %v262, %v269
    %v277 = vmul.f32 %v263, %v274
    %v278 = vld [vmem:[%s4] sm:$0xff]
    %v279 = vld [vmem:[%s4 + $0x8] sm:$0x1]
    %281 = vset.pattern.permute.xlu0 0
    %282 = vperm.xlu0 %281, %v278
    %v283 = vpop.permute.xlu0 %282
    %286 = vset.pattern.permute.xlu0 0
    %287 = vperm.xlu0 %286, %v279
    %v288 = vpop.permute.xlu0 %287
    %v290 = vadd.f32 %v276, %v283
    %v291 = vadd.f32 %v277, %v288
    %vm292 = vcmask 293888
    %293 = vst.msk [vmem:[#allocation5] sm:$0xff] %vm292, %v290
    %vm294 = vcmask 286720
    %295 = vst.msk [vmem:[#allocation5 + $0x8] sm:$0x1] %vm294, %v291
    // Predicated region
    $region34: #{tpu_custom_call.1} parent=1 // pred_check
      _
    $region35: #{tpu_custom_call.1} parent=1 // pred_check_branch
      %297 = sbr.rel (0) target = $region37
    $region36: #{tpu_custom_call.1} parent=1 // pred_region
      %s299 = ssub.s32 256, 256
      %300 = vsyncadd [#allocation3], %s299
      %s301 = sshll.u32 [#allocation5], 4
      %s302 = int_to_ptr.vmem [resolvable:$true] %s301
      %307 = dma.vmem_to_hbm [thread:$0]  %s302, 256, %s7, [#allocation3], 128, 128, 8
    $region37: #{tpu_custom_call.1} parent=1 // pred_fallthru
      _
    // Predicated region
    $region38: #{tpu_custom_call.1} parent=1 // pred_check
      _
    $region39: #{tpu_custom_call.1} parent=1 // pred_check_branch
      %309 = sbr.rel (0) target = $region41
    $region40: #{tpu_custom_call.1} parent=1 // pred_region
      %310 = dma.done [#allocation3], 256
    $region41: #{tpu_custom_call.1} parent=1 // pred_fallthru
      _
    %311 = vsyncpa [#allocation3], 1
    %312 = vsyncpa [#allocation4], 1

</llo_original>
